<compile_context>
chip_gen: v5e
topology: v5e:2x2
jax: 0.10.0
libtpu: 0.0.40
codegen_flags: <defaults>
</compile_context>

<pallas_src>
import jax
import jax.numpy as jnp
from jax.experimental import pallas as pl
from jax.experimental.pallas import tpu as pltpu


def _policy_kernel(x_ref,
                   w1_ref, b1_ref,
                   w2_ref, b2_ref,
                   w3_ref, b3_ref,
                   w4_ref, b4_ref,
                   out_ref):
    """One batch tile of the 4-layer MLP, batch-on-lanes layout.

    x_ref : (d_in, tile_b)   activations are (features, tile_b) -> lane-dense
    wN    : (out_f, in_f)    PyTorch-native Linear layout
    bN    : (out_f, 1)       column bias, broadcast over lanes
    out   : (2, tile_b)      row 0 = mean, row 1 = softplus(raw std)
    """
    x = x_ref[...]
    h1 = jnp.tanh(jnp.dot(w1_ref[...], x,
                          preferred_element_type=jnp.float32) + b1_ref[...])
    h2 = jnp.tanh(jnp.dot(w2_ref[...], h1,
                          preferred_element_type=jnp.float32) + b2_ref[...])
    h3 = jnp.tanh(jnp.dot(w3_ref[...], h2,
                          preferred_element_type=jnp.float32) + b3_ref[...])
    raw = jnp.dot(w4_ref[...], h3,
                  preferred_element_type=jnp.float32) + b4_ref[...]        # (2, tile_b)

    # Fused epilogue: numerically stable softplus == log(1 + exp(x)) on the EUP slot.
    sp = jnp.maximum(raw, 0.0) + jnp.log(1.0 + jnp.exp(-jnp.abs(raw)))
    is_mean_row = jax.lax.broadcasted_iota(jnp.int32, raw.shape, 0) == 0
    out_ref[...] = jnp.where(is_mean_row, raw, sp).astype(out_ref.dtype)


def _pick_tile_b(B, target):
    """Lane-aligned batch tile.

    Guarantees the block is legal (tile == B, i.e. full array dim, or tile % 128 == 0)
    and produces >= 2 grid steps for larger batches so v7x's two TensorCores are used.
    """
    if B <= 256:
        return B                                # single block equal to the array dim
    if B <= 2 * target:
        half = -(-B // 2)                       # cdiv(B, 2)
        return min(((half + 127) // 128) * 128, target)
    return target


def policy_net_forward(x, params, *, tile_b_target=4096):
    """PolicyNet forward.  x: (B, input_dim) f32.  Returns (mean, std), each (B, 1).

    The kernel works batch-on-lanes; the wrapper transpose of x and the final column
    views are layout plumbing (in a real pipeline, produce x as (d_in, B) upstream).
    """
    B, d_in = x.shape
    out_dim = params["w4"].shape[0]
    assert out_dim == 2, "PolicyNet forward assumes output_dim == 2 (mean, std)"

    xT = x.T                                    # (d_in, B)

    tile_b = _pick_tile_b(B, tile_b_target)
    num_tiles = pl.cdiv(B, tile_b)              # ragged last block handled by Pallas masking

    x_spec = pl.BlockSpec((d_in, tile_b), lambda i: (0, i))
    out_spec = pl.BlockSpec((out_dim, tile_b), lambda i: (0, i))

    in_specs = [x_spec]
    args = [xT]
    for layer in (1, 2, 3, 4):
        w = params[f"w{layer}"]
        b = params[f"b{layer}"]
        # Full-array, constant-index blocks: fetched once, VMEM-resident for the grid.
        in_specs.append(pl.BlockSpec(w.shape, lambda i: (0, 0)))
        in_specs.append(pl.BlockSpec(b.shape, lambda i: (0, 0)))
        args.extend((w, b))

    out = pl.pallas_call(
        _policy_kernel,
        out_shape=jax.ShapeDtypeStruct((out_dim, B), jnp.float32),
        grid=(num_tiles,),
        in_specs=in_specs,
        out_specs=out_spec,
        compiler_params=pltpu.CompilerParams(
            dimension_semantics=("parallel",)),
    )(*args)

    mean = out[0][:, None]                      # (B, 1)
    std = out[1][:, None]                       # (B, 1), softplus already applied in-kernel
    return mean, std


def init_params(key, input_dim, output_dim):
    """Deterministic synthetic initialization (uniform, PyTorch-Linear-like bounds),
    stored in PyTorch-native layout: w (out, in), b (out, 1)."""
    sizes = [(input_dim, 16), (16, 32), (32, 16), (16, output_dim)]
    params = {}
    keys = jax.random.split(key, 2 * len(sizes))
    for i, (fan_in, fan_out) in enumerate(sizes):
        bound = 1.0 / jnp.sqrt(jnp.float32(fan_in))
        w = jax.random.uniform(keys[2 * i], (fan_out, fan_in), jnp.float32,
                               minval=-bound, maxval=bound)
        b = jax.random.uniform(keys[2 * i + 1], (fan_out, 1), jnp.float32,
                               minval=-bound, maxval=bound)
        params[f"w{i + 1}"] = w
        params[f"b{i + 1}"] = b
    return params


def _reference_forward(x, params):
    h = x
    for i in range(1, 4):
        h = jnp.tanh(h @ params[f"w{i}"].T + params[f"b{i}"].T)
    out = h @ params["w4"].T + params["b4"].T
    mean = out[:, 0:1]
    std = jax.nn.softplus(out[:, 1:2])          # == log(1 + exp(x)), numerically stable
    return mean, std


if __name__ == "__main__":
    # InvertedPendulum: obs dim 4, action dim 1 -> output_dim = 2 (mean, std)
    input_dim, output_dim = 4, 2

    key = jax.random.PRNGKey(0)
    k_params, k_x1, k_x2 = jax.random.split(key, 3)
    params = init_params(k_params, input_dim, output_dim)

    # Case 1: tiny per-step batch (single full block path).
    batch_small = 8
    x_small = jax.random.normal(k_x1, (batch_small, input_dim), jnp.float32)
    mean_s, std_s = policy_net_forward(x_small, params)
    jax.block_until_ready((mean_s, std_s))
    mean_s_ref, std_s_ref = _reference_forward(x_small, params)
    assert mean_s.shape == (batch_small, 1) and std_s.shape == (batch_small, 1)
    assert jnp.allclose(mean_s, mean_s_ref, atol=1e-5), "mean mismatch (small batch)"
    assert jnp.allclose(std_s, std_s_ref, atol=1e-5), "std mismatch (small batch)"

    # Case 2: batched rollout -> 2 grid steps (megacore path) with a ragged last block,
    # exercising the no-pad / masked-boundary path.
    batch_big = 520
    x_big = jax.random.normal(k_x2, (batch_big, input_dim), jnp.float32)
    mean_b, std_b = policy_net_forward(x_big, params)
    jax.block_until_ready((mean_b, std_b))
    mean_b_ref, std_b_ref = _reference_forward(x_big, params)
    assert mean_b.shape == (batch_big, 1) and std_b.shape == (batch_big, 1)
    assert jnp.allclose(mean_b, mean_b_ref, atol=1e-5), "mean mismatch (big batch)"
    assert jnp.allclose(std_b, std_b_ref, atol=1e-5), "std mismatch (big batch)"

    print("KERNEL_OK")
</pallas_src>

<mosaic_0001>
module attributes {stable_mosaic.version = 11 : i64} {
  func.func @_policy_kernel(%arg0: i32, %arg1: memref<4x8xf32, #tpu.memory_space<vmem>>, %arg2: memref<16x4xf32, #tpu.memory_space<vmem>>, %arg3: memref<16x1xf32, #tpu.memory_space<vmem>>, %arg4: memref<32x16xf32, #tpu.memory_space<vmem>>, %arg5: memref<32x1xf32, #tpu.memory_space<vmem>>, %arg6: memref<16x32xf32, #tpu.memory_space<vmem>>, %arg7: memref<16x1xf32, #tpu.memory_space<vmem>>, %arg8: memref<2x16xf32, #tpu.memory_space<vmem>>, %arg9: memref<2x1xf32, #tpu.memory_space<vmem>>, %arg10: memref<2x8xf32, #tpu.memory_space<vmem>>) attributes {dimension_semantics = [#tpu.dimension_semantics<parallel>], iteration_bounds = array<i64: 1>, scalar_prefetch = 0 : i64, scratch_operands = 0 : i64, tpu.core_type = #tpu.core_type<tc>, window_params = [{transform_indices = @transform_0, window_bounds = array<i64: 4, 8>}, {pipeline_mode = #tpu.pipeline_mode<synchronous>, transform_indices = @transform_1, window_bounds = array<i64: 16, 4>}, {pipeline_mode = #tpu.pipeline_mode<synchronous>, transform_indices = @transform_2, window_bounds = array<i64: 16, 1>}, {pipeline_mode = #tpu.pipeline_mode<synchronous>, transform_indices = @transform_3, window_bounds = array<i64: 32, 16>}, {pipeline_mode = #tpu.pipeline_mode<synchronous>, transform_indices = @transform_4, window_bounds = array<i64: 32, 1>}, {pipeline_mode = #tpu.pipeline_mode<synchronous>, transform_indices = @transform_5, window_bounds = array<i64: 16, 32>}, {pipeline_mode = #tpu.pipeline_mode<synchronous>, transform_indices = @transform_6, window_bounds = array<i64: 16, 1>}, {pipeline_mode = #tpu.pipeline_mode<synchronous>, transform_indices = @transform_7, window_bounds = array<i64: 2, 16>}, {pipeline_mode = #tpu.pipeline_mode<synchronous>, transform_indices = @transform_8, window_bounds = array<i64: 2, 1>}, {transform_indices = @transform_9, window_bounds = array<i64: 2, 8>}]} {
    %c0 = arith.constant 0 : index
    %c0_0 = arith.constant 0 : index
    %0 = vector.load %arg1[%c0, %c0_0] : memref<4x8xf32, #tpu.memory_space<vmem>>, vector<4x8xf32>
    %c0_1 = arith.constant 0 : index
    %c0_2 = arith.constant 0 : index
    %1 = vector.load %arg2[%c0_1, %c0_2] : memref<16x4xf32, #tpu.memory_space<vmem>>, vector<16x4xf32>
    %cst = arith.constant dense<0.000000e+00> : vector<16x8xf32>
    %2 = tpu.matmul %1, %0, %cst {dimension_numbers = #tpu.dot_dimension_numbers<[1], [0], [0], [1], [0, 0, 1, 1], [], []>} : vector<16x4xf32>, vector<4x8xf32>, vector<16x8xf32> -> vector<16x8xf32>
    %c0_3 = arith.constant 0 : index
    %c0_4 = arith.constant 0 : index
    %3 = vector.load %arg3[%c0_3, %c0_4] : memref<16x1xf32, #tpu.memory_space<vmem>>, vector<16x1xf32>
    %4 = vector.broadcast %3 : vector<16x1xf32> to vector<16x8xf32>
    %5 = arith.addf %2, %4 : vector<16x8xf32>
    %6 = math.tanh %5 : vector<16x8xf32>
    %c0_5 = arith.constant 0 : index
    %c0_6 = arith.constant 0 : index
    %7 = vector.load %arg4[%c0_5, %c0_6] : memref<32x16xf32, #tpu.memory_space<vmem>>, vector<32x16xf32>
    %cst_7 = arith.constant dense<0.000000e+00> : vector<32x8xf32>
    %8 = tpu.matmul %7, %6, %cst_7 {dimension_numbers = #tpu.dot_dimension_numbers<[1], [0], [0], [1], [0, 0, 1, 1], [], []>} : vector<32x16xf32>, vector<16x8xf32>, vector<32x8xf32> -> vector<32x8xf32>
    %c0_8 = arith.constant 0 : index
    %c0_9 = arith.constant 0 : index
    %9 = vector.load %arg5[%c0_8, %c0_9] : memref<32x1xf32, #tpu.memory_space<vmem>>, vector<32x1xf32>
    %10 = vector.broadcast %9 : vector<32x1xf32> to vector<32x8xf32>
    %11 = arith.addf %8, %10 : vector<32x8xf32>
    %12 = math.tanh %11 : vector<32x8xf32>
    %c0_10 = arith.constant 0 : index
    %c0_11 = arith.constant 0 : index
    %13 = vector.load %arg6[%c0_10, %c0_11] : memref<16x32xf32, #tpu.memory_space<vmem>>, vector<16x32xf32>
    %cst_12 = arith.constant dense<0.000000e+00> : vector<16x8xf32>
    %14 = tpu.matmul %13, %12, %cst_12 {dimension_numbers = #tpu.dot_dimension_numbers<[1], [0], [0], [1], [0, 0, 1, 1], [], []>} : vector<16x32xf32>, vector<32x8xf32>, vector<16x8xf32> -> vector<16x8xf32>
    %c0_13 = arith.constant 0 : index
    %c0_14 = arith.constant 0 : index
    %15 = vector.load %arg7[%c0_13, %c0_14] : memref<16x1xf32, #tpu.memory_space<vmem>>, vector<16x1xf32>
    %16 = vector.broadcast %15 : vector<16x1xf32> to vector<16x8xf32>
    %17 = arith.addf %14, %16 : vector<16x8xf32>
    %18 = math.tanh %17 : vector<16x8xf32>
    %c0_15 = arith.constant 0 : index
    %c0_16 = arith.constant 0 : index
    %19 = vector.load %arg8[%c0_15, %c0_16] : memref<2x16xf32, #tpu.memory_space<vmem>>, vector<2x16xf32>
    %cst_17 = arith.constant dense<0.000000e+00> : vector<2x8xf32>
    %20 = tpu.matmul %19, %18, %cst_17 {dimension_numbers = #tpu.dot_dimension_numbers<[1], [0], [0], [1], [0, 0, 1, 1], [], []>} : vector<2x16xf32>, vector<16x8xf32>, vector<2x8xf32> -> vector<2x8xf32>
    %c0_18 = arith.constant 0 : index
    %c0_19 = arith.constant 0 : index
    %21 = vector.load %arg9[%c0_18, %c0_19] : memref<2x1xf32, #tpu.memory_space<vmem>>, vector<2x1xf32>
    %22 = vector.broadcast %21 : vector<2x1xf32> to vector<2x8xf32>
    %23 = arith.addf %20, %22 : vector<2x8xf32>
    %cst_20 = arith.constant 0.000000e+00 : f32
    %24 = vector.broadcast %cst_20 : f32 to vector<2x8xf32>
    %25 = arith.maximumf %23, %24 : vector<2x8xf32>
    %26 = math.absf %23 : vector<2x8xf32>
    %cst_21 = arith.constant 0.000000e+00 : f32
    %27 = vector.broadcast %cst_21 : f32 to vector<2x8xf32>
    %28 = arith.subf %27, %26 : vector<2x8xf32>
    %29 = math.exp %28 : vector<2x8xf32>
    %cst_22 = arith.constant 1.000000e+00 : f32
    %30 = vector.broadcast %cst_22 : f32 to vector<2x8xf32>
    %31 = arith.addf %30, %29 : vector<2x8xf32>
    %32 = math.log %31 : vector<2x8xf32>
    %33 = arith.addf %25, %32 : vector<2x8xf32>
    %34 = tpu.iota {dimensions = array<i32: 0>} : vector<2x8xi32>
    %c0_i32 = arith.constant 0 : i32
    %35 = vector.broadcast %c0_i32 : i32 to vector<2x8xi32>
    %36 = arith.cmpi eq, %34, %35 : vector<2x8xi32>
    %37 = arith.select %36, %23, %33 : vector<2x8xi1>, vector<2x8xf32>
    %c0_23 = arith.constant 0 : index
    %c0_24 = arith.constant 0 : index
    %38 = vector.load %arg10[%c0_23, %c0_24] : memref<2x8xf32, #tpu.memory_space<vmem>>, vector<2x8xf32>
    tpu.vector_store %arg10[%c0_23, %c0_24], %37 {strides = array<i32>} : memref<2x8xf32, #tpu.memory_space<vmem>>, vector<2x8xf32>,
    return
  }
  func.func @transform_0(%arg0: i32) -> (i32, i32) {
    %c0_i32 = arith.constant 0 : i32
    %c0_i32_0 = arith.constant 0 : i32
    return %c0_i32, %arg0 : i32, i32
  }
  func.func @transform_1(%arg0: i32) -> (i32, i32) {
    %c0_i32 = arith.constant 0 : i32
    %c0_i32_0 = arith.constant 0 : i32
    %c0_i32_1 = arith.constant 0 : i32
    return %c0_i32, %c0_i32_0 : i32, i32
  }
  func.func @transform_2(%arg0: i32) -> (i32, i32) {
    %c0_i32 = arith.constant 0 : i32
    %c0_i32_0 = arith.constant 0 : i32
    %c0_i32_1 = arith.constant 0 : i32
    return %c0_i32, %c0_i32_0 : i32, i32
  }
  func.func @transform_3(%arg0: i32) -> (i32, i32) {
    %c0_i32 = arith.constant 0 : i32
    %c0_i32_0 = arith.constant 0 : i32
    %c0_i32_1 = arith.constant 0 : i32
    return %c0_i32, %c0_i32_0 : i32, i32
  }
  func.func @transform_4(%arg0: i32) -> (i32, i32) {
    %c0_i32 = arith.constant 0 : i32
    %c0_i32_0 = arith.constant 0 : i32
    %c0_i32_1 = arith.constant 0 : i32
    return %c0_i32, %c0_i32_0 : i32, i32
  }
  func.func @transform_5(%arg0: i32) -> (i32, i32) {
    %c0_i32 = arith.constant 0 : i32
    %c0_i32_0 = arith.constant 0 : i32
    %c0_i32_1 = arith.constant 0 : i32
    return %c0_i32, %c0_i32_0 : i32, i32
  }
  func.func @transform_6(%arg0: i32) -> (i32, i32) {
    %c0_i32 = arith.constant 0 : i32
    %c0_i32_0 = arith.constant 0 : i32
    %c0_i32_1 = arith.constant 0 : i32
    return %c0_i32, %c0_i32_0 : i32, i32
  }
  func.func @transform_7(%arg0: i32) -> (i32, i32) {
    %c0_i32 = arith.constant 0 : i32
    %c0_i32_0 = arith.constant 0 : i32
    %c0_i32_1 = arith.constant 0 : i32
    return %c0_i32, %c0_i32_0 : i32, i32
  }
  func.func @transform_8(%arg0: i32) -> (i32, i32) {
    %c0_i32 = arith.constant 0 : i32
    %c0_i32_0 = arith.constant 0 : i32
    %c0_i32_1 = arith.constant 0 : i32
    return %c0_i32, %c0_i32_0 : i32, i32
  }
  func.func @transform_9(%arg0: i32) -> (i32, i32) {
    %c0_i32 = arith.constant 0 : i32
    %c0_i32_0 = arith.constant 0 : i32
    return %c0_i32, %arg0 : i32, i32
  }
}

</mosaic_0001>

<llo_original>
// kernel: tpu_custom_call.1
$region0: #{tpu_custom_call.1}
  #allocation0 [shape = 'u32[]', space=smem, size = 0x4, offset = 0x4, fixed_abs, tag = 'smem constant byte address 0x4 - core index']
  #allocation1 [shape = 'u32[72,128]{1,0:T(1,128)}', space=vmem, size = 0x9000, scoped, tag = 'internal scratch']
  %s0 = inlined_call_operand.vmem [shape: f32[4,8], index: 0, kind: input, shape index: {}]
  %s1 = inlined_call_operand.vmem [shape: f32[16,4], index: 1, kind: input, shape index: {}]
  %s2 = inlined_call_operand.vmem [shape: f32[16,1], index: 2, kind: input, shape index: {}]
  %s3 = inlined_call_operand.vmem [shape: f32[32,16], index: 3, kind: input, shape index: {}]
  %s4 = inlined_call_operand.vmem [shape: f32[32,1], index: 4, kind: input, shape index: {}]
  %s5 = inlined_call_operand.vmem [shape: f32[16,32], index: 5, kind: input, shape index: {}]
  %s6 = inlined_call_operand.vmem [shape: f32[16,1], index: 6, kind: input, shape index: {}]
  %s7 = inlined_call_operand.vmem [shape: f32[2,16], index: 7, kind: input, shape index: {}]
  %s8 = inlined_call_operand.vmem [shape: f32[2,1], index: 8, kind: input, shape index: {}]
  %s9 = inlined_call_operand.hbm [shape: f32[2,8], index: 9, kind: output, shape index: {}]
  %s10 = sld [smem:[#allocation0]]
  $region46: #{tpu_custom_call.1} parent=0
    _
  %s12 = ssub.s32 1, %s10
  %s13 = scalar_select 0, %s12, %s10
  $region1: #{tpu_custom_call.1} parent=0
    #allocation2 [shape = 'u8[1024]{0}', space=vmem, size = 0x400, scoped, tag = 'output window, operand 0, single buffered']
    #allocation3 [shape = 's32[1]{0}', space=sflag, size = 0x4, scoped, tag = 'scoped memory for tpu_custom_call.1']
    %14 = vsyncpa [#allocation3], 0
    // Predicated region
    $region2: #{tpu_custom_call.1} parent=1 // pred_check
      _
    $region3: #{tpu_custom_call.1} parent=1 // pred_check_branch
      %16 = sbr.rel (0) target = $region5
    $region4: #{tpu_custom_call.1} parent=1 // pred_region
      _
    $region5: #{tpu_custom_call.1} parent=1 // pred_fallthru
      _
    // Predicated region
    $region6: #{tpu_custom_call.1} parent=1 // pred_check
      _
    $region7: #{tpu_custom_call.1} parent=1 // pred_check_branch
      %18 = sbr.rel (0) target = $region9
    $region8: #{tpu_custom_call.1} parent=1 // pred_region
      _
    $region9: #{tpu_custom_call.1} parent=1 // pred_fallthru
      _
    // Predicated region
    $region10: #{tpu_custom_call.1} parent=1 // pred_check
      _
    $region11: #{tpu_custom_call.1} parent=1 // pred_check_branch
      %20 = sbr.rel (0) target = $region13
    $region12: #{tpu_custom_call.1} parent=1 // pred_region
      _
    $region13: #{tpu_custom_call.1} parent=1 // pred_fallthru
      _
    // Predicated region
    $region14: #{tpu_custom_call.1} parent=1 // pred_check
      _
    $region15: #{tpu_custom_call.1} parent=1 // pred_check_branch
      %22 = sbr.rel (0) target = $region17
    $region16: #{tpu_custom_call.1} parent=1 // pred_region
      _
    $region17: #{tpu_custom_call.1} parent=1 // pred_fallthru
      _
    // Predicated region
    $region18: #{tpu_custom_call.1} parent=1 // pred_check
      _
    $region19: #{tpu_custom_call.1} parent=1 // pred_check_branch
      %24 = sbr.rel (0) target = $region21
    $region20: #{tpu_custom_call.1} parent=1 // pred_region
      _
    $region21: #{tpu_custom_call.1} parent=1 // pred_fallthru
      _
    // Predicated region
    $region22: #{tpu_custom_call.1} parent=1 // pred_check
      _
    $region23: #{tpu_custom_call.1} parent=1 // pred_check_branch
      %26 = sbr.rel (0) target = $region25
    $region24: #{tpu_custom_call.1} parent=1 // pred_region
      _
    $region25: #{tpu_custom_call.1} parent=1 // pred_fallthru
      _
    // Predicated region
    $region26: #{tpu_custom_call.1} parent=1 // pred_check
      _
    $region27: #{tpu_custom_call.1} parent=1 // pred_check_branch
      %28 = sbr.rel (0) target = $region29
    $region28: #{tpu_custom_call.1} parent=1 // pred_region
      _
    $region29: #{tpu_custom_call.1} parent=1 // pred_fallthru
      _
    // Predicated region
    $region30: #{tpu_custom_call.1} parent=1 // pred_check
      _
    $region31: #{tpu_custom_call.1} parent=1 // pred_check_branch
      %30 = sbr.rel (0) target = $region33
    $region32: #{tpu_custom_call.1} parent=1 // pred_region
      _
    $region33: #{tpu_custom_call.1} parent=1 // pred_fallthru
      _
    // Predicated region
    $region34: #{tpu_custom_call.1} parent=1 // pred_check
      _
    $region35: #{tpu_custom_call.1} parent=1 // pred_check_branch
      %32 = sbr.rel (0) target = $region37
    $region36: #{tpu_custom_call.1} parent=1 // pred_region
      _
    $region37: #{tpu_custom_call.1} parent=1 // pred_fallthru
      _
    %v33 = vld [vmem:[%s0] sm:$0xf]
    %v34 = vld [vmem:[%s1] sm:$0xff]
    %v35 = vld [vmem:[%s1 + $0x8] sm:$0xff]
    %v36 = vld [vmem:[%s2] sm:$0xff]
    %v37 = vld [vmem:[%s2 + $0x8] sm:$0xff]
    %39 = vset.pattern.permute.xlu0 0
    %40 = vperm.xlu0 %39, %v36
    %v41 = vpop.permute.xlu0 %40
    %44 = vset.pattern.permute.xlu0 0
    %45 = vperm.xlu0 %44, %v37
    %v46 = vpop.permute.xlu0 %45
    %vm48 = vcmask 31744
    %v50 = vsel %vm48, %v34, 0
    %v53 = vsel %vm48, %v35, 0
    %vm55 = vcmask 1043456
    %v57 = vsel %vm55, %v33, 0
    %59 = vmatpush.msra.mxu0 0.0
    %60 = vmatpush.msra.mxu0 0.0
    %61 = vmatpush.msra.mxu0 0.0
    %62 = vmatpush.msra.mxu0 0.0
    %63 = vmatpush.msra.mxu0 0.0
    %64 = vmatpush.msra.mxu0 0.0
    %65 = vmatpush.msra.mxu0 0.0
    %66 = vmatpush.msra.mxu0 0.0
    %67 = vmatpush.msra.mxu0 0.0
    %68 = vmatpush.msra.mxu0 0.0
    %69 = vmatpush.msra.mxu0 0.0
    %70 = vmatpush.msra.mxu0 0.0
    %71 = vmatpush.msra.mxu0 0.0
    %72 = vmatpush.msra.mxu0 0.0
    %73 = vmatpush.msra.mxu0 0.0
    %74 = vmatpush.msra.mxu0 %v57
    %75 = vmatmul.f32.gmra.mxu0 %v50
    %v76 = vpop.f32.mrf.mxu0
    %v77 = vadd.f32 %v41, %v76
    %78 = vmatmul.f32.gmra.mxu0 %v53
    %v79 = vpop.f32.mrf.mxu0
    %v80 = vadd.f32 %v46, %v79
    %81 = vdwg.mxu0
    %v82 = vtanh.pop %v77
    %v83 = vtanh.pop %v80
    %v84 = vld [vmem:[%s3] sm:$0xff]
    %v85 = vld [vmem:[%s3 + $0x8] sm:$0xff]
    %v86 = vld [vmem:[%s3 + $0x10] sm:$0xff]
    %v87 = vld [vmem:[%s3 + $0x18] sm:$0xff]
    %v88 = vld [vmem:[%s4] sm:$0xff]
    %v89 = vld [vmem:[%s4 + $0x8] sm:$0xff]
    %v90 = vld [vmem:[%s4 + $0x10] sm:$0xff]
    %v91 = vld [vmem:[%s4 + $0x18] sm:$0xff]
    %93 = vset.pattern.permute.xlu0 0
    %94 = vperm.xlu0 %93, %v88
    %v95 = vpop.permute.xlu0 %94
    %98 = vset.pattern.permute.xlu0 0
    %99 = vperm.xlu0 %98, %v89
    %v100 = vpop.permute.xlu0 %99
    %103 = vset.pattern.permute.xlu0 0
    %104 = vperm.xlu0 %103, %v90
    %v105 = vpop.permute.xlu0 %104
    %108 = vset.pattern.permute.xlu0 0
    %109 = vperm.xlu0 %108, %v91
    %v110 = vpop.permute.xlu0 %109
    %vm112 = vcmask 130048
    %v114 = vsel %vm112, %v84, 0
    %v117 = vsel %vm112, %v85, 0
    %v120 = vsel %vm112, %v86, 0
    %v123 = vsel %vm112, %v87, 0
    %125 = vmatpush.msra.mxu0 0.0
    %126 = vmatpush.msra.mxu0 0.0
    %127 = vmatpush.msra.mxu0 0.0
    %128 = vmatpush.msra.mxu0 0.0
    %129 = vmatpush.msra.mxu0 0.0
    %130 = vmatpush.msra.mxu0 0.0
    %131 = vmatpush.msra.mxu0 0.0
    %132 = vmatpush.msra.mxu0 0.0
    %133 = vmatpush.msra.mxu0 0.0
    %134 = vmatpush.msra.mxu0 0.0
    %135 = vmatpush.msra.mxu0 0.0
    %136 = vmatpush.msra.mxu0 0.0
    %137 = vmatpush.msra.mxu0 0.0
    %138 = vmatpush.msra.mxu0 0.0
    %139 = vmatpush.msra.mxu0 %v83
    %140 = vmatpush.msra.mxu0 %v82
    %141 = vmatmul.f32.gmra.mxu0 %v114
    %v142 = vpop.f32.mrf.mxu0
    %v143 = vadd.f32 %v95, %v142
    %144 = vmatmul.f32.gmra.mxu0 %v117
    %v145 = vpop.f32.mrf.mxu0
    %v146 = vadd.f32 %v100, %v145
    %147 = vmatmul.f32.gmra.mxu0 %v120
    %v148 = vpop.f32.mrf.mxu0
    %v149 = vadd.f32 %v105, %v148
    %150 = vmatmul.f32.gmra.mxu0 %v123
    %v151 = vpop.f32.mrf.mxu0
    %v152 = vadd.f32 %v110, %v151
    %153 = vdwg.mxu0
    %v154 = vtanh.pop %v143
    %v155 = vtanh.pop %v146
    %v156 = vtanh.pop %v149
    %v157 = vtanh.pop %v152
    %v158 = vld [vmem:[%s5] sm:$0xff]
    %v159 = vld [vmem:[%s5 + $0x8] sm:$0xff]
    %v160 = vld [vmem:[%s6] sm:$0xff]
    %v161 = vld [vmem:[%s6 + $0x8] sm:$0xff]
    %163 = vset.pattern.permute.xlu0 0
    %164 = vperm.xlu0 %163, %v160
    %v165 = vpop.permute.xlu0 %164
    %168 = vset.pattern.permute.xlu0 0
    %169 = vperm.xlu0 %168, %v161
    %v170 = vpop.permute.xlu0 %169
    %vm172 = vcmask 261120
    %v174 = vsel %vm172, %v158, 0
    %v177 = vsel %vm172, %v159, 0
    %179 = vmatpush.msra.mxu0 0.0
    %180 = vmatpush.msra.mxu0 0.0
    %181 = vmatpush.msra.mxu0 0.0
    %182 = vmatpush.msra.mxu0 0.0
    %183 = vmatpush.msra.mxu0 0.0
    %184 = vmatpush.msra.mxu0 0.0
    %185 = vmatpush.msra.mxu0 0.0
    %186 = vmatpush.msra.mxu0 0.0
    %187 = vmatpush.msra.mxu0 0.0
    %188 = vmatpush.msra.mxu0 0.0
    %189 = vmatpush.msra.mxu0 0.0
    %190 = vmatpush.msra.mxu0 0.0
    %191 = vmatpush.msra.mxu0 %v157
    %192 = vmatpush.msra.mxu0 %v156
    %193 = vmatpush.msra.mxu0 %v155
    %194 = vmatpush.msra.mxu0 %v154
    %195 = vmatmul.f32.gmra.mxu0 %v174
    %v196 = vpop.f32.mrf.mxu0
    %v197 = vadd.f32 %v165, %v196
    %198 = vmatmul.f32.gmra.mxu0 %v177
    %v199 = vpop.f32.mrf.mxu0
    %v200 = vadd.f32 %v170, %v199
    %201 = vdwg.mxu0
    %v202 = vtanh.pop %v197
    %v203 = vtanh.pop %v200
    %v204 = vld [vmem:[%s7] sm:$0x3]
    %v205 = vld [vmem:[%s8] sm:$0x3]
    %207 = vset.pattern.permute.xlu0 0
    %208 = vperm.xlu0 %207, %v205
    %v209 = vpop.permute.xlu0 %208
    %v212 = vsel %vm112, %v204, 0
    %214 = vmatpush.msra.mxu0 0.0
    %215 = vmatpush.msra.mxu0 0.0
    %216 = vmatpush.msra.mxu0 0.0
    %217 = vmatpush.msra.mxu0 0.0
    %218 = vmatpush.msra.mxu0 0.0
    %219 = vmatpush.msra.mxu0 0.0
    %220 = vmatpush.msra.mxu0 0.0
    %221 = vmatpush.msra.mxu0 0.0
    %222 = vmatpush.msra.mxu0 0.0
    %223 = vmatpush.msra.mxu0 0.0
    %224 = vmatpush.msra.mxu0 0.0
    %225 = vmatpush.msra.mxu0 0.0
    %226 = vmatpush.msra.mxu0 0.0
    %227 = vmatpush.msra.mxu0 0.0
    %228 = vmatpush.msra.mxu0 %v203
    %229 = vmatpush.msra.mxu0 %v202
    %230 = vmatmul.f32.gmra.mxu0 %v212
    %v231 = vpop.f32.mrf.mxu0
    %v232 = vadd.f32 %v209, %v231
    %233 = vdwg.mxu0
    %v234 = vmax.f32 %v232, 0.0
    %v235 = vand.u32 2147483647, %v232
    %v236 = vsub.f32 0.0, %v235
    %v237 = vmul.f32 %v236, 1.442695
    %v238 = vpow.pop %v237
    %v239 = vadd.f32 %v238, 1.0
    %v240 = vlog2.pop %v239
    %v241 = vmul.f32 %v240, 0.6931472
    %v242 = vadd.f32 %v234, %v241
    %v243 = vlaneseq
    %v244 = vshrl.u32 %v243, 7
    %vm245 = vcmp.eq.s32.totalorder %v244, 0
    %v246 = vsel %vm245, %v232, %v242
    %vm247 = vcmask 58368
    %248 = vst.msk [vmem:[#allocation2] sm:$0x3] %vm247, %v246
    // Predicated region
    $region38: #{tpu_custom_call.1} parent=1 // pred_check
      _
    $region39: #{tpu_custom_call.1} parent=1 // pred_check_branch
      %250 = sbr.rel (0) target = $region41
    $region40: #{tpu_custom_call.1} parent=1 // pred_region
      %252 = vsyncadd [#allocation3], 0
      %s254 = sshll.u32 [#allocation2], 4
      %s255 = int_to_ptr.vmem [resolvable:$true] %s254
      %s256 = sshll.u32 %s9, 4
      %s257 = int_to_ptr.hbm [resolvable:$true] %s256
      %259 = dma.vmem_to_hbm [thread:$0]  %s255, 32, %s257, [#allocation3]
    $region41: #{tpu_custom_call.1} parent=1 // pred_fallthru
      _
    // Predicated region
    $region42: #{tpu_custom_call.1} parent=1 // pred_check
      _
    $region43: #{tpu_custom_call.1} parent=1 // pred_check_branch
      %261 = sbr.rel (0) target = $region45
    $region44: #{tpu_custom_call.1} parent=1 // pred_region
      %263 = dma.done [#allocation3], 32
    $region45: #{tpu_custom_call.1} parent=1 // pred_fallthru
      _
    %264 = vsyncpa [#allocation3], 1

</llo_original>
